<compile_context>
chip_gen: v7x
topology: tpu7x:2x2x1
jax: 0.10.0
libtpu: 0.0.40
codegen_flags: <defaults>
</compile_context>

<pallas_src>
import functools

import jax
import jax.numpy as jnp
from jax.experimental import pallas as pl
from jax.experimental.pallas import tpu as pltpu


def _bce_dice_kernel(pred_ref, target_ref, bce_ref, dice_ref, *, eps, n_valid, rois_per_block):
    """Per-block kernel over R = rois_per_block label-selected ROI masks.

    pred_ref  : (R, HW) logits of the label-selected class (VMEM tile, native dtype)
    target_ref: (R, HW) binary mask targets (VMEM tile)
    bce_ref   : (1, 128) block partial: sum of BCE elements over this block's valid ROIs
    dice_ref  : (1, 128) block partial: sum of per-ROI dice losses over this block's valid ROIs
    """
    x = pred_ref[...].astype(jnp.float32)
    t = target_ref[...].astype(jnp.float32)

    one = jnp.float32(1.0)
    e = jnp.exp(-jnp.abs(x))          # single transcendental, reused by BCE and sigmoid
    denom = one + e

    # Numerically-stable BCE with logits: max(x,0) - x*t + log(1 + exp(-|x|)).
    # denom is already materialized, so log(denom) stays a single EUP op.
    bce_el = jnp.maximum(x, 0.0) - x * t + jnp.log(denom)
    bce_rows = jnp.sum(bce_el, axis=-1, keepdims=True)           # (R, 1) lane-axis reduce

    # sigmoid(x) = where(x>=0, 1, e) / (1 + e), reusing e.
    # Approx reciprocal runs on the EUP slot; one Newton step (VPU, ~free) restores precision.
    r = pl.reciprocal(denom, approx=True)
    r = r * (2.0 - denom * r)
    p = jnp.where(x >= 0.0, one, e) * r

    # mmdet dice per ROI: d = 2*sum(p*t) / ((sum(p*p)+eps) + (sum(t*t)+eps)); loss = 1 - d.
    # target is a binary mask, so sum(t*t) == sum(t) (drops one full-tile multiply).
    a = jnp.sum(p * t, axis=-1, keepdims=True)
    b = jnp.sum(p * p, axis=-1, keepdims=True) + eps
    c = jnp.sum(t, axis=-1, keepdims=True) + eps
    dice_rows = one - 2.0 * a / (b + c)                          # (R, 1)

    # Mask out the ROIs that only exist because N was padded to a multiple of R.
    row = pl.program_id(0) * rois_per_block + jax.lax.broadcasted_iota(
        jnp.int32, (rois_per_block, 1), 0)
    valid = (row < n_valid).astype(jnp.float32)

    bce_blk = jnp.sum(bce_rows * valid)
    dice_blk = jnp.sum(dice_rows * valid)

    # Lane-dense (1, 128) stores (no tiny masked scalar stores); wrapper reads lane 0.
    bce_ref[...] = jnp.broadcast_to(bce_blk, bce_ref.shape).astype(jnp.float32)
    dice_ref[...] = jnp.broadcast_to(dice_blk, dice_ref.shape).astype(jnp.float32)


class BCEDiceLossPallas:
    """JAX/Pallas port of BCE_Dice_Loss. count_iter / alpha schedule stays host-side (glue)."""

    def __init__(self, start_alpha, step_alpha, max_alpha, alpha_strategy, eps=1e-3):
        self.start_alpha = float(start_alpha)
        self.step_alpha = float(step_alpha)
        self.max_alpha = float(max_alpha)
        self.alpha_strategy = alpha_strategy
        self.eps = float(eps)
        self.count_iter = 0

    def _coefs(self):
        cur_alpha = self.start_alpha + int(self.count_iter / 1120) * self.step_alpha
        if cur_alpha > self.max_alpha:
            cur_alpha = self.max_alpha
        if self.alpha_strategy in ("constant", "increase"):
            return 1.0, cur_alpha
        if self.alpha_strategy == "rebalance":
            return 1.0 - cur_alpha, cur_alpha
        raise ValueError(f"unknown alpha_strategy: {self.alpha_strategy}")

    def __call__(self, pred, target, label):
        N, C, H, W = pred.shape
        HW = H * W
        c_bce, c_dice = self._coefs()
        self.count_iter += 1

        # Wrapper-side label gather: touches only N*H*W elements (vs N*C*H*W) and lets the
        # kernel work on a dense, lane-friendly (rows, H*W) layout. Native dtype kept (bf16 ok).
        # TODO(synk): clamp redirects out-of-range labels to a real class instead of masking
        #             the ROI; verify against the repo's label convention.
        label_i = jnp.clip(label.astype(jnp.int32), 0, C - 1)
        sel = jnp.take_along_axis(pred, label_i[:, None, None, None], axis=1)  # (N,1,H,W)
        sel = sel.reshape(N, HW)
        tgt = target.reshape(N, HW)

        # ROI batch size per grid step: multiple of 8 (sublane axis), capped at 128 so large N
        # keeps >= ~8 grid steps (feeds both v7x TensorCores via the "parallel" grid axis).
        r = min(128, max(8, ((pl.cdiv(N, 8) + 7) // 8) * 8))
        n_pad = pl.cdiv(N, r) * r
        if n_pad != N:
            sel = jnp.pad(sel, ((0, n_pad - N), (0, 0)))
            tgt = jnp.pad(tgt, ((0, n_pad - N), (0, 0)))
        num_blocks = n_pad // r

        kernel = functools.partial(
            _bce_dice_kernel, eps=self.eps, n_valid=N, rois_per_block=r)

        bce_part, dice_part = pl.pallas_call(
            kernel,
            out_shape=(
                jax.ShapeDtypeStruct((num_blocks, 128), jnp.float32),  # per-block BCE sums
                jax.ShapeDtypeStruct((num_blocks, 128), jnp.float32),  # per-block dice sums
            ),
            grid_spec=pl.GridSpec(
                grid=(num_blocks,),  # R ROIs per step; BlockSpec auto double-buffers tiles
                in_specs=[
                    pl.BlockSpec((r, HW), lambda i: (i, 0)),
                    pl.BlockSpec((r, HW), lambda i: (i, 0)),
                ],
                out_specs=[
                    pl.BlockSpec((1, 128), lambda i: (i, 0)),
                    pl.BlockSpec((1, 128), lambda i: (i, 0)),
                ],
            ),
            compiler_params=pltpu.CompilerParams(
                dimension_semantics=("parallel",),  # no cross-step state -> megacore-shardable
            ),
        )(sel, tgt)

        # Tiny final reduction + alpha mixing in JAX (keeps the ROI grid axis parallel).
        # NOTE: coefficients derive from host-side count_iter; under jit they bake as constants.
        bce = jnp.sum(bce_part[:, 0]) / jnp.float32(N * H * W)   # mean over (N, H, W)
        dice = jnp.sum(dice_part[:, 0]) / jnp.float32(N)         # mean over ROIs
        loss = jnp.float32(c_bce) * bce + jnp.float32(c_dice) * dice
        return loss.reshape(1)


def _reference_loss(pred, target, label, coefs, eps):
    """Pure-JAX reference for correctness checking."""
    N, C, H, W = pred.shape
    sel = pred[jnp.arange(N), label]                    # (N, H, W)
    t = target.astype(jnp.float32)
    x = sel.astype(jnp.float32)
    bce = jnp.mean(jnp.maximum(x, 0.0) - x * t + jnp.log1p(jnp.exp(-jnp.abs(x))))
    p = jax.nn.sigmoid(x).reshape(N, -1)
    tt = t.reshape(N, -1)
    a = jnp.sum(p * tt, axis=1)
    b = jnp.sum(p * p, axis=1) + eps
    c = jnp.sum(tt * tt, axis=1) + eps
    dice = jnp.mean(1.0 - 2.0 * a / (b + c))
    return coefs[0] * bce + coefs[1] * dice


if __name__ == "__main__":
    key = jax.random.PRNGKey(0)
    N, C, H, W = 2, 4, 16, 16
    k1, k2, k3 = jax.random.split(key, 3)

    pred = jax.random.normal(k1, (N, C, H, W), dtype=jnp.float32)
    target = (jax.random.uniform(k2, (N, H, W)) > 0.5).astype(jnp.float32)
    label = jax.random.randint(k3, (N,), 0, C, dtype=jnp.int32)

    loss_mod = BCEDiceLossPallas(
        start_alpha=0.5, step_alpha=0.1, max_alpha=1.0, alpha_strategy="rebalance"
    )

    # f32 path (rebalance, count_iter=0 -> coefs (0.5, 0.5))
    out = loss_mod(pred, target, label)
    out = jax.block_until_ready(out)
    ref = _reference_loss(pred, target, label, (0.5, 0.5), 1e-3)
    assert out.shape == (1,)
    assert jnp.allclose(out[0], ref, rtol=1e-4, atol=1e-4), (out, ref)

    # bf16 input path (on-chip upcast; no wrapper-side full-tensor astype pass)
    pred_bf = pred.astype(jnp.bfloat16)
    out_bf = loss_mod(pred_bf, target, label)
    out_bf = jax.block_until_ready(out_bf)
    ref_bf = _reference_loss(pred_bf, target, label, (0.5, 0.5), 1e-3)
    assert jnp.allclose(out_bf[0], ref_bf, rtol=1e-3, atol=1e-3), (out_bf, ref_bf)

    print("KERNEL_OK")
</pallas_src>

<mosaic_0001>
module attributes {stable_mosaic.version = 11 : i64} {
  func.func @_bce_dice_kernel(%arg0: i32, %arg1: memref<8x256xf32, #tpu.memory_space<vmem>>, %arg2: memref<8x256xf32, #tpu.memory_space<vmem>>, %arg3: memref<1x128xf32, #tpu.memory_space<vmem>>, %arg4: memref<1x128xf32, #tpu.memory_space<vmem>>) attributes {dimension_semantics = [#tpu.dimension_semantics<parallel>], iteration_bounds = array<i64: 1>, scalar_prefetch = 0 : i64, scratch_operands = 0 : i64, tpu.core_type = #tpu.core_type<tc>, window_params = [{transform_indices = @transform_0, window_bounds = array<i64: 8, 256>}, {transform_indices = @transform_1, window_bounds = array<i64: 8, 256>}, {transform_indices = @transform_2, window_bounds = array<i64: 1, 128>}, {transform_indices = @transform_3, window_bounds = array<i64: 1, 128>}]} {
    %c0 = arith.constant 0 : index
    %c0_0 = arith.constant 0 : index
    %0 = vector.load %arg1[%c0, %c0_0] : memref<8x256xf32, #tpu.memory_space<vmem>>, vector<8x256xf32>
    %c0_1 = arith.constant 0 : index
    %c0_2 = arith.constant 0 : index
    %1 = vector.load %arg2[%c0_1, %c0_2] : memref<8x256xf32, #tpu.memory_space<vmem>>, vector<8x256xf32>
    %2 = math.absf %0 : vector<8x256xf32>
    %cst = arith.constant 0.000000e+00 : f32
    %3 = vector.broadcast %cst : f32 to vector<8x256xf32>
    %4 = arith.subf %3, %2 : vector<8x256xf32>
    %5 = math.exp %4 : vector<8x256xf32>
    %cst_3 = arith.constant 1.000000e+00 : f32
    %6 = vector.broadcast %cst_3 : f32 to vector<8x256xf32>
    %7 = arith.addf %6, %5 : vector<8x256xf32>
    %cst_4 = arith.constant 0.000000e+00 : f32
    %8 = vector.broadcast %cst_4 : f32 to vector<8x256xf32>
    %9 = arith.maximumf %0, %8 : vector<8x256xf32>
    %10 = arith.mulf %0, %1 : vector<8x256xf32>
    %11 = arith.subf %9, %10 : vector<8x256xf32>
    %12 = math.log %7 : vector<8x256xf32>
    %13 = arith.addf %11, %12 : vector<8x256xf32>
    %cst_5 = arith.constant dense<0.000000e+00> : vector<8xf32>
    %14 = vector.multi_reduction <add>, %13, %cst_5 [1] : vector<8x256xf32> to vector<8xf32>
    %15 = vector.shape_cast %14 : vector<8xf32> to vector<8x1xf32>
    %16 = tpu.reciprocal %7 {approx = true} : vector<8x256xf32> -> vector<8x256xf32>
    %17 = arith.mulf %7, %16 : vector<8x256xf32>
    %cst_6 = arith.constant 2.000000e+00 : f32
    %18 = vector.broadcast %cst_6 : f32 to vector<8x256xf32>
    %19 = arith.subf %18, %17 : vector<8x256xf32>
    %20 = arith.mulf %16, %19 : vector<8x256xf32>
    %cst_7 = arith.constant 0.000000e+00 : f32
    %21 = vector.broadcast %cst_7 : f32 to vector<8x256xf32>
    %22 = arith.cmpf oge, %0, %21 : vector<8x256xf32>
    %cst_8 = arith.constant 1.000000e+00 : f32
    %23 = vector.broadcast %cst_8 : f32 to vector<8x256xf32>
    %24 = arith.select %22, %23, %5 : vector<8x256xi1>, vector<8x256xf32>
    %25 = arith.mulf %24, %20 : vector<8x256xf32>
    %26 = arith.mulf %25, %1 : vector<8x256xf32>
    %cst_9 = arith.constant dense<0.000000e+00> : vector<8xf32>
    %27 = vector.multi_reduction <add>, %26, %cst_9 [1] : vector<8x256xf32> to vector<8xf32>
    %28 = vector.shape_cast %27 : vector<8xf32> to vector<8x1xf32>
    %29 = arith.mulf %25, %25 : vector<8x256xf32>
    %cst_10 = arith.constant dense<0.000000e+00> : vector<8xf32>
    %30 = vector.multi_reduction <add>, %29, %cst_10 [1] : vector<8x256xf32> to vector<8xf32>
    %31 = vector.shape_cast %30 : vector<8xf32> to vector<8x1xf32>
    %cst_11 = arith.constant 1.000000e-03 : f32
    %32 = vector.broadcast %cst_11 : f32 to vector<8x1xf32>
    %33 = arith.addf %31, %32 : vector<8x1xf32>
    %cst_12 = arith.constant dense<0.000000e+00> : vector<8xf32>
    %34 = vector.multi_reduction <add>, %1, %cst_12 [1] : vector<8x256xf32> to vector<8xf32>
    %35 = vector.shape_cast %34 : vector<8xf32> to vector<8x1xf32>
    %cst_13 = arith.constant 1.000000e-03 : f32
    %36 = vector.broadcast %cst_13 : f32 to vector<8x1xf32>
    %37 = arith.addf %35, %36 : vector<8x1xf32>
    %cst_14 = arith.constant 2.000000e+00 : f32
    %38 = vector.broadcast %cst_14 : f32 to vector<8x1xf32>
    %39 = arith.mulf %38, %28 : vector<8x1xf32>
    %40 = arith.addf %33, %37 : vector<8x1xf32>
    %41 = arith.divf %39, %40 : vector<8x1xf32>
    %cst_15 = arith.constant 1.000000e+00 : f32
    %42 = vector.broadcast %cst_15 : f32 to vector<8x1xf32>
    %43 = arith.subf %42, %41 : vector<8x1xf32>
    %c8_i32 = arith.constant 8 : i32
    %44 = arith.muli %arg0, %c8_i32 : i32
    %45 = tpu.iota {dimensions = array<i32: 0>} : vector<8x1xi32>
    %46 = vector.broadcast %44 : i32 to vector<8x1xi32>
    %47 = arith.addi %46, %45 : vector<8x1xi32>
    %c2_i32 = arith.constant 2 : i32
    %48 = vector.broadcast %c2_i32 : i32 to vector<8x1xi32>
    %49 = arith.cmpi slt, %47, %48 : vector<8x1xi32>
    %50 = arith.extui %49 : vector<8x1xi1> to vector<8x1xi32>
    %51 = arith.sitofp %50 : vector<8x1xi32> to vector<8x1xf32>
    %52 = arith.mulf %15, %51 : vector<8x1xf32>
    %53 = vector.shape_cast %52 : vector<8x1xf32> to vector<1x8x1xf32>
    %cst_16 = arith.constant dense<0.000000e+00> : vector<1xf32>
    %54 = vector.multi_reduction <add>, %53, %cst_16 [1, 2] : vector<1x8x1xf32> to vector<1xf32>
    %55 = vector.shape_cast %54 : vector<1xf32> to vector<1x1x1xf32>
    %56 = vector.extract %55[0, 0, 0] : f32 from vector<1x1x1xf32>
    %57 = arith.mulf %43, %51 : vector<8x1xf32>
    %58 = vector.shape_cast %57 : vector<8x1xf32> to vector<1x8x1xf32>
    %cst_17 = arith.constant dense<0.000000e+00> : vector<1xf32>
    %59 = vector.multi_reduction <add>, %58, %cst_17 [1, 2] : vector<1x8x1xf32> to vector<1xf32>
    %60 = vector.shape_cast %59 : vector<1xf32> to vector<1x1x1xf32>
    %61 = vector.extract %60[0, 0, 0] : f32 from vector<1x1x1xf32>
    %62 = vector.broadcast %56 : f32 to vector<1x128xf32>
    %c0_18 = arith.constant 0 : index
    %c0_19 = arith.constant 0 : index
    %63 = vector.load %arg3[%c0_18, %c0_19] : memref<1x128xf32, #tpu.memory_space<vmem>>, vector<1x128xf32>
    tpu.vector_store %arg3[%c0_18, %c0_19], %62 {strides = array<i32>} : memref<1x128xf32, #tpu.memory_space<vmem>>, vector<1x128xf32>,
    %64 = vector.broadcast %61 : f32 to vector<1x128xf32>
    %c0_20 = arith.constant 0 : index
    %c0_21 = arith.constant 0 : index
    %65 = vector.load %arg4[%c0_20, %c0_21] : memref<1x128xf32, #tpu.memory_space<vmem>>, vector<1x128xf32>
    tpu.vector_store %arg4[%c0_20, %c0_21], %64 {strides = array<i32>} : memref<1x128xf32, #tpu.memory_space<vmem>>, vector<1x128xf32>,
    return
  }
  func.func @transform_0(%arg0: i32) -> (i32, i32) {
    %c0_i32 = arith.constant 0 : i32
    %c0_i32_0 = arith.constant 0 : i32
    return %arg0, %c0_i32 : i32, i32
  }
  func.func @transform_1(%arg0: i32) -> (i32, i32) {
    %c0_i32 = arith.constant 0 : i32
    %c0_i32_0 = arith.constant 0 : i32
    return %arg0, %c0_i32 : i32, i32
  }
  func.func @transform_2(%arg0: i32) -> (i32, i32) {
    %c0_i32 = arith.constant 0 : i32
    %c0_i32_0 = arith.constant 0 : i32
    return %arg0, %c0_i32 : i32, i32
  }
  func.func @transform_3(%arg0: i32) -> (i32, i32) {
    %c0_i32 = arith.constant 0 : i32
    %c0_i32_0 = arith.constant 0 : i32
    return %arg0, %c0_i32 : i32, i32
  }
}

</mosaic_0001>

<llo_original>
// kernel: tpu_custom_call.1
$region0: #{tpu_custom_call.1}
  #allocation0 [shape = 'u32[]', space=smem, size = 0x4, offset = 0x4, fixed_abs, tag = 'smem constant byte address 0x4 - core index']
  #allocation1 [shape = 'u32[144,128]{1,0:T(1,128)}', space=vmem, size = 0x12000, scoped, tag = 'internal scratch']
  %s0 = inlined_call_operand.hbm [shape: f32[8,256], index: 0, kind: input, shape index: {}]
  %s1 = inlined_call_operand.hbm [shape: f32[8,256], index: 1, kind: input, shape index: {}]
  %s2 = inlined_call_operand.hbm [shape: f32[1,128], index: 2, kind: output, shape index: {0}]
  %s3 = inlined_call_operand.hbm [shape: f32[1,128], index: 3, kind: output, shape index: {1}]
  %4 = xla_tuple %s2, %s3
  %s5 = sld [smem:[#allocation0]]
  $region34: #{tpu_custom_call.1} parent=0
    _
  %s7 = ssub.s32 1, %s5
  %s8 = scalar_select 0, %s7, %s5
  $region1: #{tpu_custom_call.1} parent=0
    #allocation2 [shape = 'u8[8192]{0}', space=vmem, size = 0x2000, scoped, tag = 'input window, operand 0, single buffered']
    #allocation3 [shape = 's32[1]{0}', space=sflag, size = 0x4, scoped, tag = 'scoped memory for tpu_custom_call.1']
    #allocation4 [shape = 's32[1]{0}', space=sflag, size = 0x4, scoped, tag = 'scoped memory for tpu_custom_call.1']
    #allocation5 [shape = 'u8[8192]{0}', space=vmem, size = 0x2000, scoped, tag = 'input window, operand 1, single buffered']
    #allocation6 [shape = 's32[1]{0}', space=sflag, size = 0x4, scoped, tag = 'scoped memory for tpu_custom_call.1']
    #allocation7 [shape = 'u8[512]{0}', space=vmem, size = 0x400, scoped, tag = 'output window, operand 0, single buffered']
    #allocation8 [shape = 'u8[512]{0}', space=vmem, size = 0x400, scoped, tag = 'output window, operand 1, single buffered']
    #allocation9 [shape = 's32[1]{0}', space=sflag, size = 0x4, scoped, tag = 'scoped memory for tpu_custom_call.1']
    %9 = vsyncpa [#allocation3], 0
    %10 = vsyncpa [#allocation6], 0
    %11 = vsyncpa [#allocation4], 0
    %12 = vsyncpa [#allocation9], 0
    // Predicated region
    $region2: #{tpu_custom_call.1} parent=1 // pred_check
      _
    $region3: #{tpu_custom_call.1} parent=1 // pred_check_branch
      %14 = sbr.rel (0) target = $region5
    $region4: #{tpu_custom_call.1} parent=1 // pred_region
      %s16 = ssub.s32 256, 256
      %17 = vsyncadd [#allocation3], %s16
      %s19 = sshll.u32 [#allocation2], 4
      %s20 = int_to_ptr.vmem [resolvable:$true] %s19
      %22 = dma.hbm_to_vmem [thread:$0]  %s0, 256, %s20, [#allocation3]
    $region5: #{tpu_custom_call.1} parent=1 // pred_fallthru
      _
    // Predicated region
    $region6: #{tpu_custom_call.1} parent=1 // pred_check
      _
    $region7: #{tpu_custom_call.1} parent=1 // pred_check_branch
      %24 = sbr.rel (0) target = $region9
    $region8: #{tpu_custom_call.1} parent=1 // pred_region
      %s26 = ssub.s32 256, 256
      %27 = vsyncadd [#allocation6], %s26
      %s29 = sshll.u32 [#allocation5], 4
      %s30 = int_to_ptr.vmem [resolvable:$true] %s29
      %32 = dma.hbm_to_vmem [thread:$0]  %s1, 256, %s30, [#allocation6]
    $region9: #{tpu_custom_call.1} parent=1 // pred_fallthru
      _
    // Predicated region
    $region10: #{tpu_custom_call.1} parent=1 // pred_check
      _
    $region11: #{tpu_custom_call.1} parent=1 // pred_check_branch
      %34 = sbr.rel (0) target = $region13
    $region12: #{tpu_custom_call.1} parent=1 // pred_region
      %35 = dma.done [#allocation3], 256
    $region13: #{tpu_custom_call.1} parent=1 // pred_fallthru
      _
    // Predicated region
    $region14: #{tpu_custom_call.1} parent=1 // pred_check
      _
    $region15: #{tpu_custom_call.1} parent=1 // pred_check_branch
      %37 = sbr.rel (0) target = $region17
    $region16: #{tpu_custom_call.1} parent=1 // pred_region
      %38 = dma.done [#allocation6], 256
    $region17: #{tpu_custom_call.1} parent=1 // pred_fallthru
      _
    %v39 = vld [vmem:[#allocation2] sm:$0xff]
    %v40 = vld [vmem:[#allocation2 + $0x8] sm:$0xff]
    %v41 = vld [vmem:[#allocation5] sm:$0xff]
    %v42 = vld [vmem:[#allocation5 + $0x8] sm:$0xff]
    %v43 = vand.u32 2147483647, %v39
    %v44 = vand.u32 2147483647, %v40
    %v45 = vsub.f32 0.0, %v43
    %v46 = vsub.f32 0.0, %v44
    %v47 = vmul.f32 %v45, 1.442695
    %v48 = vpow.pop %v47
    %v49 = vmul.f32 %v46, 1.442695
    %v50 = vpow.pop %v49
    %v51 = vadd.f32 %v48, 1.0
    %v52 = vadd.f32 %v50, 1.0
    %v53 = vmax.f32 %v39, 0.0
    %v54 = vmax.f32 %v40, 0.0
    %v55 = vmul.f32 %v39, %v41
    %v56 = vmul.f32 %v40, %v42
    %v57 = vsub.f32 %v53, %v55
    %v58 = vsub.f32 %v54, %v56
    %v59 = vlog2.pop %v51
    %v60 = vmul.f32 %v59, 0.6931472
    %v61 = vlog2.pop %v52
    %v62 = vmul.f32 %v61, 0.6931472
    %v63 = vadd.f32 %v57, %v60
    %v64 = vadd.f32 %v58, %v62
    %v65 = vadd.f32 %v63, %v64
    %66 = vadd.xlane.f32.xlu0 %v65
    %v67 = vpop.xlane.xlu0 %66
    %v68 = vrcp.pop %v51
    %v69 = vrcp.pop %v52
    %v70 = vmul.f32 %v51, %v68
    %v71 = vmul.f32 %v52, %v69
    %v72 = vsub.f32 2.0, %v70
    %v73 = vsub.f32 2.0, %v71
    %v74 = vmul.f32 %v68, %v72
    %v75 = vmul.f32 %v69, %v73
    %vm76 = vcmp.ge.f32.partialorder %v39, 0.0
    %vm77 = vcmp.ge.f32.partialorder %v40, 0.0
    %v78 = vsel %vm76, 1.0, %v48
    %v79 = vsel %vm77, 1.0, %v50
    %v80 = vmul.f32 %v78, %v74
    %v81 = vmul.f32 %v79, %v75
    %v82 = vmul.f32 %v80, %v41
    %v83 = vmul.f32 %v81, %v42
    %v84 = vadd.f32 %v82, %v83
    %85 = vadd.xlane.f32.xlu0 %v84
    %v86 = vpop.xlane.xlu0 %85
    %v87 = vmul.f32 %v80, %v80
    %v88 = vmul.f32 %v81, %v81
    %v89 = vadd.f32 %v87, %v88
    %90 = vadd.xlane.f32.xlu0 %v89
    %v91 = vpop.xlane.xlu0 %90
    %v92 = vadd.f32 %v91, 0.001
    %v93 = vadd.f32 %v41, %v42
    %94 = vadd.xlane.f32.xlu0 %v93
    %v95 = vpop.xlane.xlu0 %94
    %v96 = vadd.f32 %v95, 0.001
    %v97 = vmul.f32 %v86, 2.0
    %v98 = vadd.f32 %v92, %v96
    %v99 = vrcp.pop %v98
    %v100 = vmul.f32 %v97, %v99
    %v101 = vsub.f32 1.0, %v100
    %s102 = smul.u32 0, 8
    %v103 = vlaneseq
    %v104 = vshrl.u32 %v103, 7
    %v105 = vstv %s102
    %v106 = vadd.s32 %v105, %v104
    %vm107 = vcmp.lt.s32.totalorder %v106, 2
    %v108 = vsel %vm107, 1, 0
    %v109 = vcvt.s32.f32 %v108
    %v110 = vmul.f32 %v67, %v109
    %vm111 = vcmask 7168
    %v112 = vsel %vm111, %v110, 0.0
    %113 = vadd.xlane.f32.xlu0 %v112
    %v114 = vpop.xlane.xlu0 %113
    %v115 = vrot.slane %v114, 4
    %v116 = vadd.f32 %v114, %v115
    %v117 = vrot.slane %v116, 2
    %v118 = vadd.f32 %v116, %v117
    %v119 = vrot.slane %v118, 1
    %v120 = vadd.f32 %v118, %v119
    %s121 = vtos %v120
    %v122 = vmul.f32 %v101, %v109
    %v123 = vsel %vm111, %v122, 0.0
    %124 = vadd.xlane.f32.xlu0 %v123
    %v125 = vpop.xlane.xlu0 %124
    %v126 = vrot.slane %v125, 4
    %v127 = vadd.f32 %v125, %v126
    %v128 = vrot.slane %v127, 2
    %v129 = vadd.f32 %v127, %v128
    %v130 = vrot.slane %v129, 1
    %v131 = vadd.f32 %v129, %v130
    %s132 = vtos %v131
    %v133 = vstv %s121
    %134 = vst [vmem:[#allocation7] sm:$0x1] %v133
    %v135 = vstv %s132
    %136 = vst [vmem:[#allocation8] sm:$0x1] %v135
    // Predicated region
    $region18: #{tpu_custom_call.1} parent=1 // pred_check
      _
    $region19: #{tpu_custom_call.1} parent=1 // pred_check_branch
      %138 = sbr.rel (0) target = $region21
    $region20: #{tpu_custom_call.1} parent=1 // pred_region
      %s140 = ssub.s32 16, 16
      %141 = vsyncadd [#allocation4], %s140
      %s143 = sshll.u32 [#allocation7], 4
      %s144 = int_to_ptr.vmem [resolvable:$true] %s143
      %146 = dma.vmem_to_hbm [thread:$0]  %s144, 16, %s2, [#allocation4]
    $region21: #{tpu_custom_call.1} parent=1 // pred_fallthru
      _
    // Predicated region
    $region22: #{tpu_custom_call.1} parent=1 // pred_check
      _
    $region23: #{tpu_custom_call.1} parent=1 // pred_check_branch
      %148 = sbr.rel (0) target = $region25
    $region24: #{tpu_custom_call.1} parent=1 // pred_region
      %s150 = ssub.s32 16, 16
      %151 = vsyncadd [#allocation9], %s150
      %s153 = sshll.u32 [#allocation8], 4
      %s154 = int_to_ptr.vmem [resolvable:$true] %s153
      %156 = dma.vmem_to_hbm [thread:$0]  %s154, 16, %s3, [#allocation9]
    $region25: #{tpu_custom_call.1} parent=1 // pred_fallthru
      _
    // Predicated region
    $region26: #{tpu_custom_call.1} parent=1 // pred_check
      _
    $region27: #{tpu_custom_call.1} parent=1 // pred_check_branch
      %158 = sbr.rel (0) target = $region29
    $region28: #{tpu_custom_call.1} parent=1 // pred_region
      %159 = dma.done [#allocation4], 16
    $region29: #{tpu_custom_call.1} parent=1 // pred_fallthru
      _
    // Predicated region
    $region30: #{tpu_custom_call.1} parent=1 // pred_check
      _
    $region31: #{tpu_custom_call.1} parent=1 // pred_check_branch
      %161 = sbr.rel (0) target = $region33
    $region32: #{tpu_custom_call.1} parent=1 // pred_region
      %162 = dma.done [#allocation9], 16
    $region33: #{tpu_custom_call.1} parent=1 // pred_fallthru
      _
    %163 = vsyncpa [#allocation3], 1
    %164 = vsyncpa [#allocation6], 1
    %165 = vsyncpa [#allocation4], 1
    %166 = vsyncpa [#allocation9], 1

</llo_original>
